<compile_context>
chip_gen: v5e
topology: v5e:2x2
jax: 0.10.0
libtpu: 0.0.40
codegen_flags: <defaults>
</compile_context>

<pallas_src>
import jax
import jax.numpy as jnp
from jax.experimental import pallas as pl
from jax.experimental.pallas import tpu as pltpu


# Tile-sized f32 temporaries assumed live simultaneously in the kernel body
# (cast inputs, shifted logits, exponentials, probs, KL product).
_K_LIVE_F32_TILES = 6


def _kd_logit_stand_kernel(temp_ref, ys_ref, yt_ref, out_ref):
    """One batch tile -> one (1, 8, 128) lane-dense partial-sum output block."""
    T = temp_ref[0, 0]
    ys = ys_ref[...].astype(jnp.float32)
    yt = yt_ref[...].astype(jnp.float32)
    C = ys.shape[-1]

    def scaled_shifted(z):
        # Logit standardization with two exactness-preserving simplifications:
        #  * softmax is shift-invariant, so the per-row mean never needs to be
        #    subtracted from the softmax argument;
        #  * the per-row max *is* subtracted before accumulating sum/sumsq, so
        #    the single-pass unbiased variance (torch.std, N-1) does not suffer
        #    catastrophic cancellation, and the shifted tensor doubles as the
        #    max-stabilized softmax argument.
        m = jnp.max(z, axis=-1, keepdims=True)
        zc = z - m                                        # <= 0 everywhere
        s1 = jnp.sum(zc, axis=-1, keepdims=True)
        s2 = jnp.sum(zc * zc, axis=-1, keepdims=True)
        var = (s2 - s1 * (s1 * (1.0 / C))) / (C - 1.0)
        std = jnp.sqrt(jnp.maximum(var, 0.0))             # guard tiny negative cancellation
        # The 1e-7 guard keeps inv finite on all-zero (padding) rows; do not remove.
        inv = pl.reciprocal((std + 1e-07) * T, approx=True)   # EUP vrcp
        return zc * inv                                    # == z/((eps+std)*T) - rowmax

    us = scaled_shifted(ys)                                # student (max-shifted)
    ut = scaled_shifted(yt)                                # teacher (max-shifted)

    # Log-softmax denominators (per-row). The student exp tile is only needed
    # through its row sum; teacher exponentials are reused for softmax + logZ.
    log_zs = jnp.log(jnp.sum(jnp.exp(us), axis=-1, keepdims=True))
    et = jnp.exp(ut)
    zt = jnp.sum(et, axis=-1, keepdims=True)
    log_zt = jnp.log(zt)
    pt = et * pl.reciprocal(zt, approx=True)               # teacher softmax

    # KL without materializing log_ps / log_pt tiles:
    #   log_pt - log_ps = (ut - us) + (log_zs - log_zt)
    kl = pt * ((ut - us) + (log_zs - log_zt))
    total = jnp.sum(kl)                                    # one full reduce per block

    # Lane-dense unmasked store of this block's partial sum.
    out_ref[...] = jnp.full(out_ref.shape, total, dtype=out_ref.dtype)


def _round_up(x, m):
    return ((x + m - 1) // m) * m


def _kd_loss_jnp(y_s, y_t, temp):
    """Plain-XLA reference / small-problem fallback (identical semantics)."""
    T = jnp.asarray(temp, jnp.float32)
    y_s = y_s.astype(jnp.float32)
    y_t = y_t.astype(jnp.float32)
    C = y_s.shape[-1]

    def normalize(z):
        mean = jnp.mean(z, axis=-1, keepdims=True)
        std = jnp.sqrt(jnp.sum((z - mean) ** 2, axis=-1, keepdims=True) / (C - 1))
        return (z - mean) / (1e-07 + std)

    log_ps = jax.nn.log_softmax(normalize(y_s) / T, axis=-1)
    log_pt = jax.nn.log_softmax(normalize(y_t) / T, axis=-1)
    pt = jnp.exp(log_pt)
    kl = jnp.sum(pt * (log_pt - log_ps)) / y_s.shape[0]
    return kl * T * T


def _vmem_limit_bytes():
    """Per-generation VMEM limit: ~75% of capacity, capped at 100 MiB.

    128-MiB parts (v5e/v6e) -> 96 MiB; 64-MiB/TC v7x -> 48 MiB (also the
    conservative fallback when the query is unavailable)."""
    cap = 64 * 1024 * 1024
    try:
        cap = int(getattr(pltpu.get_tpu_info(), "vmem_capacity_bytes", cap))
    except Exception:
        pass
    return min(int(cap * 3 // 4), 100 * 1024 * 1024)


def distill_kl_logit_stand(y_s, y_t, temp, *, max_tile_rows=4096,
                           jnp_fallback_elems=256 * 1024):
    """KD loss with logit standardization. y_s, y_t: [B, C] logits; temp: scalar."""
    assert y_s.ndim == 2 and y_s.shape == y_t.shape, "expect [B, C] logits"
    B, C = y_s.shape
    assert C >= 2, "need at least two classes for an unbiased std"

    # Tiny problems: pallas_call launch + per-step overhead dominates; the
    # fused XLA computation is faster and simpler there.
    if B * C <= jnp_fallback_elems:
        return _kd_loss_jnp(y_s, y_t, temp)

    itemsize = max(jnp.dtype(y_s.dtype).itemsize, jnp.dtype(y_t.dtype).itemsize)
    # Sublane granularity per input packing (f32: 8, bf16: 16, int8/fp8: 32).
    tile_mult = 8 * max(1, 4 // itemsize)

    # --- Tile rows derived against the *total* VMEM live set ---------------
    # 2 inputs x 2 pipeline buffers in the input dtype, plus ~K_LIVE tile-sized
    # f32 temporaries inside the body; a few MiB headroom is left for the
    # (8,128) output blocks, semaphores and compiler scratch.
    vmem_limit = _vmem_limit_bytes()
    live_budget = max(vmem_limit - 8 * 1024 * 1024, 4 * 1024 * 1024)
    bytes_per_row = (2 * 2 * itemsize + _K_LIVE_F32_TILES * 4) * C
    tb = max(tile_mult,
             (min(live_budget // bytes_per_row, max_tile_rows) // tile_mult) * tile_mult)

    # --- Minimize tail padding: rebalance TB across the block count --------
    n_blocks = pl.cdiv(B, tb)
    tb = _round_up(pl.cdiv(B, n_blocks), tile_mult)
    if n_blocks == 1 and B > tile_mult:
        # Guarantee >= 2 grid steps so both v7x TensorCores get work.
        n_blocks = 2
        tb = _round_up(pl.cdiv(B, 2), tile_mult)
    b_pad = n_blocks * tb

    if b_pad != B:
        # Zero rows give identical uniform student/teacher distributions
        # (finite thanks to the 1e-7 std guard) -> exactly zero KL, so the
        # padding is loss-neutral.
        pad = ((0, b_pad - B), (0, 0))
        y_s = jnp.pad(y_s, pad)
        y_t = jnp.pad(y_t, pad)

    temp2d = jnp.asarray(temp, dtype=jnp.float32).reshape(1, 1)

    grid_spec = pltpu.PrefetchScalarGridSpec(
        num_scalar_prefetch=0,
        grid=(n_blocks,),
        in_specs=[
            pl.BlockSpec(memory_space=pltpu.MemorySpace.SMEM),      # temperature
            # NOTE: on v5e bump the two input specs to pipeline_mode=pl.Buffered(3)
            # if xprof shows per-step DMA-wait gaps; default Buffered(2) keeps
            # VMEM slack on v7x.
            pl.BlockSpec((tb, C), lambda i: (i, 0)),                # student tile
            pl.BlockSpec((tb, C), lambda i: (i, 0)),                # teacher tile
        ],
        out_specs=pl.BlockSpec((1, 8, 128), lambda i: (i, 0, 0)),
    )

    partials = pl.pallas_call(
        _kd_logit_stand_kernel,
        out_shape=jax.ShapeDtypeStruct((n_blocks, 8, 128), jnp.float32),
        grid_spec=grid_spec,
        compiler_params=pltpu.CompilerParams(
            dimension_semantics=("parallel",),
            vmem_limit_bytes=vmem_limit,
        ),
    )(temp2d, y_s, y_t)

    T = jnp.asarray(temp, jnp.float32)
    # batchmean over the true batch size, times T^2 (matches the PyTorch module).
    return jnp.sum(partials[:, 0, 0]) * T * T / B


if __name__ == "__main__":
    key = jax.random.PRNGKey(0)
    k1, k2, k3, k4 = jax.random.split(key, 4)

    # Small case consistent with the module's forward (logits: [batch, classes]).
    B, C = 8, 128
    y_s = jax.random.normal(k1, (B, C), dtype=jnp.float32) * 3.0
    y_t = jax.random.normal(k2, (B, C), dtype=jnp.float32) * 3.0
    temp = 4.0

    # Force the Pallas path (the default threshold would route this tiny case
    # to the plain-XLA fallback).
    loss = distill_kl_logit_stand(y_s, y_t, temp, jnp_fallback_elems=0)
    jax.block_until_ready(loss)
    ref = _kd_loss_jnp(y_s, y_t, temp)
    # Tolerance reflects the approx (EUP) reciprocals (~2^-12 relative).
    assert jnp.allclose(loss, ref, atol=2e-3, rtol=2e-3), (loss, ref)

    # Same inputs through the default entry point exercise the small-problem
    # jnp fallback path.
    loss_fb = distill_kl_logit_stand(y_s, y_t, temp)
    jax.block_until_ready(loss_fb)
    assert jnp.allclose(loss_fb, ref, atol=1e-5, rtol=1e-5), (loss_fb, ref)

    # Larger, non-divisible batch in bf16: exercises tiling, zero-row padding,
    # the fully-parallel multi-block grid and the in-kernel f32 cast.
    B2, C2 = 200, 256
    y_s2 = (jax.random.normal(k3, (B2, C2), dtype=jnp.float32) * 3.0).astype(jnp.bfloat16)
    y_t2 = (jax.random.normal(k4, (B2, C2), dtype=jnp.float32) * 3.0).astype(jnp.bfloat16)
    loss2 = distill_kl_logit_stand(y_s2, y_t2, 2.0, max_tile_rows=64,
                                   jnp_fallback_elems=0)
    jax.block_until_ready(loss2)
    ref2 = _kd_loss_jnp(y_s2, y_t2, 2.0)
    assert jnp.allclose(loss2, ref2, atol=5e-3, rtol=5e-3), (loss2, ref2)

    print("KERNEL_OK")
</pallas_src>

<mosaic_0001>
module attributes {stable_mosaic.version = 11 : i64} {
  func.func @_kd_logit_stand_kernel(%arg0: i32, %arg1: memref<1x1xf32, #tpu.memory_space<smem>>, %arg2: memref<8x128xf32, #tpu.memory_space<vmem>>, %arg3: memref<8x128xf32, #tpu.memory_space<vmem>>, %arg4: memref<1x8x128xf32, #tpu.memory_space<vmem>>) attributes {dimension_semantics = [#tpu.dimension_semantics<parallel>], iteration_bounds = array<i64: 1>, scalar_prefetch = 0 : i64, scratch_operands = 0 : i64, tpu.core_type = #tpu.core_type<tc>, window_params = [{transform_indices = @transform_0, window_bounds = array<i64: 1, 1>}, {transform_indices = @transform_1, window_bounds = array<i64: 8, 128>}, {transform_indices = @transform_2, window_bounds = array<i64: 8, 128>}, {transform_indices = @transform_3, window_bounds = array<i64: 1, 8, 128>}]} {
    %c0 = arith.constant 0 : index
    %c0_0 = arith.constant 0 : index
    %0 = memref.load %arg1[%c0, %c0_0] : memref<1x1xf32, #tpu.memory_space<smem>>
    %c0_1 = arith.constant 0 : index
    %c0_2 = arith.constant 0 : index
    %1 = vector.load %arg2[%c0_1, %c0_2] : memref<8x128xf32, #tpu.memory_space<vmem>>, vector<8x128xf32>
    %c0_3 = arith.constant 0 : index
    %c0_4 = arith.constant 0 : index
    %2 = vector.load %arg3[%c0_3, %c0_4] : memref<8x128xf32, #tpu.memory_space<vmem>>, vector<8x128xf32>
    %cst = arith.constant dense<0xFF800000> : vector<8xf32>
    %3 = vector.multi_reduction <maximumf>, %1, %cst [1] : vector<8x128xf32> to vector<8xf32>
    %4 = vector.shape_cast %3 : vector<8xf32> to vector<8x1xf32>
    %5 = vector.broadcast %4 : vector<8x1xf32> to vector<8x128xf32>
    %6 = arith.subf %1, %5 : vector<8x128xf32>
    %cst_5 = arith.constant dense<0.000000e+00> : vector<8xf32>
    %7 = vector.multi_reduction <add>, %6, %cst_5 [1] : vector<8x128xf32> to vector<8xf32>
    %8 = vector.shape_cast %7 : vector<8xf32> to vector<8x1xf32>
    %9 = arith.mulf %6, %6 : vector<8x128xf32>
    %cst_6 = arith.constant dense<0.000000e+00> : vector<8xf32>
    %10 = vector.multi_reduction <add>, %9, %cst_6 [1] : vector<8x128xf32> to vector<8xf32>
    %11 = vector.shape_cast %10 : vector<8xf32> to vector<8x1xf32>
    %cst_7 = arith.constant 7.812500e-03 : f32
    %12 = vector.broadcast %cst_7 : f32 to vector<8x1xf32>
    %13 = arith.mulf %8, %12 : vector<8x1xf32>
    %14 = arith.mulf %8, %13 : vector<8x1xf32>
    %15 = arith.subf %11, %14 : vector<8x1xf32>
    %cst_8 = arith.constant 1.270000e+02 : f32
    %16 = vector.broadcast %cst_8 : f32 to vector<8x1xf32>
    %17 = arith.divf %15, %16 : vector<8x1xf32>
    %cst_9 = arith.constant 0.000000e+00 : f32
    %18 = vector.broadcast %cst_9 : f32 to vector<8x1xf32>
    %19 = arith.maximumf %17, %18 : vector<8x1xf32>
    %20 = math.sqrt %19 : vector<8x1xf32>
    %cst_10 = arith.constant 1.000000e-07 : f32
    %21 = vector.broadcast %cst_10 : f32 to vector<8x1xf32>
    %22 = arith.addf %20, %21 : vector<8x1xf32>
    %23 = vector.broadcast %0 : f32 to vector<8x1xf32>
    %24 = arith.mulf %22, %23 : vector<8x1xf32>
    %25 = tpu.reciprocal %24 {approx = true} : vector<8x1xf32> -> vector<8x1xf32>
    %26 = vector.broadcast %25 : vector<8x1xf32> to vector<8x128xf32>
    %27 = arith.mulf %6, %26 : vector<8x128xf32>
    %cst_11 = arith.constant dense<0xFF800000> : vector<8xf32>
    %28 = vector.multi_reduction <maximumf>, %2, %cst_11 [1] : vector<8x128xf32> to vector<8xf32>
    %29 = vector.shape_cast %28 : vector<8xf32> to vector<8x1xf32>
    %30 = vector.broadcast %29 : vector<8x1xf32> to vector<8x128xf32>
    %31 = arith.subf %2, %30 : vector<8x128xf32>
    %cst_12 = arith.constant dense<0.000000e+00> : vector<8xf32>
    %32 = vector.multi_reduction <add>, %31, %cst_12 [1] : vector<8x128xf32> to vector<8xf32>
    %33 = vector.shape_cast %32 : vector<8xf32> to vector<8x1xf32>
    %34 = arith.mulf %31, %31 : vector<8x128xf32>
    %cst_13 = arith.constant dense<0.000000e+00> : vector<8xf32>
    %35 = vector.multi_reduction <add>, %34, %cst_13 [1] : vector<8x128xf32> to vector<8xf32>
    %36 = vector.shape_cast %35 : vector<8xf32> to vector<8x1xf32>
    %cst_14 = arith.constant 7.812500e-03 : f32
    %37 = vector.broadcast %cst_14 : f32 to vector<8x1xf32>
    %38 = arith.mulf %33, %37 : vector<8x1xf32>
    %39 = arith.mulf %33, %38 : vector<8x1xf32>
    %40 = arith.subf %36, %39 : vector<8x1xf32>
    %cst_15 = arith.constant 1.270000e+02 : f32
    %41 = vector.broadcast %cst_15 : f32 to vector<8x1xf32>
    %42 = arith.divf %40, %41 : vector<8x1xf32>
    %cst_16 = arith.constant 0.000000e+00 : f32
    %43 = vector.broadcast %cst_16 : f32 to vector<8x1xf32>
    %44 = arith.maximumf %42, %43 : vector<8x1xf32>
    %45 = math.sqrt %44 : vector<8x1xf32>
    %cst_17 = arith.constant 1.000000e-07 : f32
    %46 = vector.broadcast %cst_17 : f32 to vector<8x1xf32>
    %47 = arith.addf %45, %46 : vector<8x1xf32>
    %48 = vector.broadcast %0 : f32 to vector<8x1xf32>
    %49 = arith.mulf %47, %48 : vector<8x1xf32>
    %50 = tpu.reciprocal %49 {approx = true} : vector<8x1xf32> -> vector<8x1xf32>
    %51 = vector.broadcast %50 : vector<8x1xf32> to vector<8x128xf32>
    %52 = arith.mulf %31, %51 : vector<8x128xf32>
    %53 = math.exp %27 : vector<8x128xf32>
    %cst_18 = arith.constant dense<0.000000e+00> : vector<8xf32>
    %54 = vector.multi_reduction <add>, %53, %cst_18 [1] : vector<8x128xf32> to vector<8xf32>
    %55 = vector.shape_cast %54 : vector<8xf32> to vector<8x1xf32>
    %56 = math.log %55 : vector<8x1xf32>
    %57 = math.exp %52 : vector<8x128xf32>
    %cst_19 = arith.constant dense<0.000000e+00> : vector<8xf32>
    %58 = vector.multi_reduction <add>, %57, %cst_19 [1] : vector<8x128xf32> to vector<8xf32>
    %59 = vector.shape_cast %58 : vector<8xf32> to vector<8x1xf32>
    %60 = math.log %59 : vector<8x1xf32>
    %61 = tpu.reciprocal %59 {approx = true} : vector<8x1xf32> -> vector<8x1xf32>
    %62 = vector.broadcast %61 : vector<8x1xf32> to vector<8x128xf32>
    %63 = arith.mulf %57, %62 : vector<8x128xf32>
    %64 = arith.subf %52, %27 : vector<8x128xf32>
    %65 = arith.subf %56, %60 : vector<8x1xf32>
    %66 = vector.broadcast %65 : vector<8x1xf32> to vector<8x128xf32>
    %67 = arith.addf %64, %66 : vector<8x128xf32>
    %68 = arith.mulf %63, %67 : vector<8x128xf32>
    %69 = vector.shape_cast %68 : vector<8x128xf32> to vector<1x8x128xf32>
    %cst_20 = arith.constant dense<0.000000e+00> : vector<1xf32>
    %70 = vector.multi_reduction <add>, %69, %cst_20 [1, 2] : vector<1x8x128xf32> to vector<1xf32>
    %71 = vector.shape_cast %70 : vector<1xf32> to vector<1x1x1xf32>
    %72 = vector.extract %71[0, 0, 0] : f32 from vector<1x1x1xf32>
    %73 = vector.broadcast %72 : f32 to vector<1x8x128xf32>
    %c0_21 = arith.constant 0 : index
    %c0_22 = arith.constant 0 : index
    %c0_23 = arith.constant 0 : index
    %74 = vector.load %arg4[%c0_21, %c0_22, %c0_23] : memref<1x8x128xf32, #tpu.memory_space<vmem>>, vector<1x8x128xf32>
    tpu.vector_store %arg4[%c0_21, %c0_22, %c0_23], %73 {strides = array<i32>} : memref<1x8x128xf32, #tpu.memory_space<vmem>>, vector<1x8x128xf32>,
    return
  }
  func.func @transform_0(%arg0: i32) -> (i32, i32) {
    %c0_i32 = arith.constant 0 : i32
    %c0_i32_0 = arith.constant 0 : i32
    %c0_i32_1 = arith.constant 0 : i32
    return %c0_i32, %c0_i32_0 : i32, i32
  }
  func.func @transform_1(%arg0: i32) -> (i32, i32) {
    %c0_i32 = arith.constant 0 : i32
    %c0_i32_0 = arith.constant 0 : i32
    return %arg0, %c0_i32 : i32, i32
  }
  func.func @transform_2(%arg0: i32) -> (i32, i32) {
    %c0_i32 = arith.constant 0 : i32
    %c0_i32_0 = arith.constant 0 : i32
    return %arg0, %c0_i32 : i32, i32
  }
  func.func @transform_3(%arg0: i32) -> (i32, i32, i32) {
    %c0_i32 = arith.constant 0 : i32
    %c0_i32_0 = arith.constant 0 : i32
    %c0_i32_1 = arith.constant 0 : i32
    return %arg0, %c0_i32, %c0_i32_0 : i32, i32, i32
  }
}

</mosaic_0001>

<llo_original>
// kernel: tpu_custom_call.1
$region0: #{tpu_custom_call.1}
  #allocation0 [shape = 'u32[]', space=smem, size = 0x4, offset = 0x4, fixed_abs, tag = 'smem constant byte address 0x4 - core index']
  #allocation1 [shape = 'u32[72,128]{1,0:T(1,128)}', space=vmem, size = 0x9000, scoped, tag = 'internal scratch']
  #allocation2 [shape = 'f32[1,1]{1,0:T(1,128)S(6)}', space=smem, size = 0x200, scoped, tag = 'scoped memory for tpu_custom_call.1']
  %s0 = inlined_call_operand.<no memory space> [shape: f32[1,1], index: 0, kind: input, shape index: {}]
  %s1 = inlined_call_operand.hbm [shape: f32[8,128], index: 1, kind: input, shape index: {}]
  %s2 = inlined_call_operand.hbm [shape: f32[8,128], index: 2, kind: input, shape index: {}]
  %s3 = inlined_call_operand.hbm [shape: f32[1,8,128], index: 3, kind: output, shape index: {}]
  %s4 = sld [smem:[#allocation0]]
  $region30: #{tpu_custom_call.1} parent=0
    _
  %s6 = ssub.s32 1, %s4
  %s7 = scalar_select 0, %s6, %s4
  %8 = sst [smem:[#allocation2]] %s0
  $region1: #{tpu_custom_call.1} parent=0
    #allocation3 [shape = 'u8[4096]{0}', space=vmem, size = 0x1000, scoped, tag = 'input window, operand 1, single buffered']
    #allocation4 [shape = 's32[1]{0}', space=sflag, size = 0x4, scoped, tag = 'scoped memory for tpu_custom_call.1']
    #allocation5 [shape = 's32[1]{0}', space=sflag, size = 0x4, scoped, tag = 'scoped memory for tpu_custom_call.1']
    #allocation6 [shape = 'u8[4096]{0}', space=vmem, size = 0x1000, scoped, tag = 'input window, operand 2, single buffered']
    #allocation7 [shape = 's32[1]{0}', space=sflag, size = 0x4, scoped, tag = 'scoped memory for tpu_custom_call.1']
    #allocation8 [shape = 'u8[4096]{0}', space=vmem, size = 0x1000, scoped, tag = 'output window, operand 0, single buffered']
    %9 = vsyncpa [#allocation4], 0
    %10 = vsyncpa [#allocation7], 0
    %11 = vsyncpa [#allocation5], 0
    // Predicated region
    $region2: #{tpu_custom_call.1} parent=1 // pred_check
      _
    $region3: #{tpu_custom_call.1} parent=1 // pred_check_branch
      %13 = sbr.rel (0) target = $region5
    $region4: #{tpu_custom_call.1} parent=1 // pred_region
      _
    $region5: #{tpu_custom_call.1} parent=1 // pred_fallthru
      _
    // Predicated region
    $region6: #{tpu_custom_call.1} parent=1 // pred_check
      _
    $region7: #{tpu_custom_call.1} parent=1 // pred_check_branch
      %15 = sbr.rel (0) target = $region9
    $region8: #{tpu_custom_call.1} parent=1 // pred_region
      %17 = vsyncadd [#allocation4], 0
      %s19 = sshll.u32 %s1, 4
      %s20 = int_to_ptr.hbm [resolvable:$true] %s19
      %s21 = sshll.u32 [#allocation3], 4
      %s22 = int_to_ptr.vmem [resolvable:$true] %s21
      %24 = dma.hbm_to_vmem [thread:$0]  %s20, 128, %s22, [#allocation4]
    $region9: #{tpu_custom_call.1} parent=1 // pred_fallthru
      _
    // Predicated region
    $region10: #{tpu_custom_call.1} parent=1 // pred_check
      _
    $region11: #{tpu_custom_call.1} parent=1 // pred_check_branch
      %26 = sbr.rel (0) target = $region13
    $region12: #{tpu_custom_call.1} parent=1 // pred_region
      %28 = vsyncadd [#allocation7], 0
      %s30 = sshll.u32 %s2, 4
      %s31 = int_to_ptr.hbm [resolvable:$true] %s30
      %s32 = sshll.u32 [#allocation6], 4
      %s33 = int_to_ptr.vmem [resolvable:$true] %s32
      %35 = dma.hbm_to_vmem [thread:$0]  %s31, 128, %s33, [#allocation7]
    $region13: #{tpu_custom_call.1} parent=1 // pred_fallthru
      _
    // Predicated region
    $region14: #{tpu_custom_call.1} parent=1 // pred_check
      _
    $region15: #{tpu_custom_call.1} parent=1 // pred_check_branch
      %37 = sbr.rel (0) target = $region17
    $region16: #{tpu_custom_call.1} parent=1 // pred_region
      %39 = dma.done [#allocation4], 128
    $region17: #{tpu_custom_call.1} parent=1 // pred_fallthru
      _
    // Predicated region
    $region18: #{tpu_custom_call.1} parent=1 // pred_check
      _
    $region19: #{tpu_custom_call.1} parent=1 // pred_check_branch
      %41 = sbr.rel (0) target = $region21
    $region20: #{tpu_custom_call.1} parent=1 // pred_region
      %43 = dma.done [#allocation7], 128
    $region21: #{tpu_custom_call.1} parent=1 // pred_fallthru
      _
    %s44 = sld [smem:[#allocation2]]
    %v45 = vld [vmem:[#allocation3] sm:$0xff]
    %v46 = vld [vmem:[#allocation6] sm:$0xff]
    %47 = vmax.xlane.f32.xlu0 %v45
    %v48 = vpop.xlane.xlu0 %47
    %v49 = vsub.f32 %v45, %v48
    %50 = vadd.xlane.f32.xlu0 %v49
    %v51 = vpop.xlane.xlu0 %50
    %v52 = vmul.f32 %v49, %v49
    %53 = vadd.xlane.f32.xlu0 %v52
    %v54 = vpop.xlane.xlu0 %53
    %v55 = vmul.f32 %v51, 0.0078125
    %v56 = vmul.f32 %v51, %v55
    %v57 = vsub.f32 %v54, %v56
    %v58 = vrcp.pop 127.0
    %v59 = vmul.f32 127.0, %v58
    %v60 = vsub.f32 1.0, %v59
    %v61 = vmul.f32 %v58, %v60
    %v62 = vadd.f32 %v58, %v61
    %vm63 = vweird.f32 %v58
    %v64 = vsel %vm63, %v58, %v62
    %v65 = vmul.f32 %v57, %v64
    %v66 = vmax.f32 %v65, 0.0
    %v67 = vrsqrt.pop %v66
    %v68 = vmul.f32 %v67, %v66
    %v69 = vmul.f32 %v68, %v67
    %v70 = vmul.f32 0.5, %v69
    %v71 = vsub.f32 1.5, %v70
    %v72 = vmul.f32 %v67, %v71
    %v73 = vmul.f32 %v66, %v72
    %vm74 = vcmp.eq.f32.partialorder %v66, inf
    %v75 = vsel %vm74, %v66, %v73
    %vm76 = vcmp.eq.f32.partialorder %v66, 0.0
    %v77 = vand.u32 %v66, 2147483648
    %v78 = vsel %vm76, %v77, %v75
    %v79 = vadd.f32 %v78, 1e-07
    %v80 = vstv %s44
    %v81 = vmul.f32 %v79, %v80
    %v82 = vrcp.pop %v81
    %v83 = vmul.f32 %v49, %v82
    %84 = vmax.xlane.f32.xlu0 %v46
    %v85 = vpop.xlane.xlu0 %84
    %v86 = vsub.f32 %v46, %v85
    %87 = vadd.xlane.f32.xlu0 %v86
    %v88 = vpop.xlane.xlu0 %87
    %v89 = vmul.f32 %v86, %v86
    %90 = vadd.xlane.f32.xlu0 %v89
    %v91 = vpop.xlane.xlu0 %90
    %v92 = vmul.f32 %v88, 0.0078125
    %v93 = vmul.f32 %v88, %v92
    %v94 = vsub.f32 %v91, %v93
    %v95 = vmul.f32 %v94, %v64
    %v96 = vmax.f32 %v95, 0.0
    %v97 = vrsqrt.pop %v96
    %v98 = vmul.f32 %v97, %v96
    %v99 = vmul.f32 %v98, %v97
    %v100 = vmul.f32 0.5, %v99
    %v101 = vsub.f32 1.5, %v100
    %v102 = vmul.f32 %v97, %v101
    %v103 = vmul.f32 %v96, %v102
    %vm104 = vcmp.eq.f32.partialorder %v96, inf
    %v105 = vsel %vm104, %v96, %v103
    %vm106 = vcmp.eq.f32.partialorder %v96, 0.0
    %v107 = vand.u32 %v96, 2147483648
    %v108 = vsel %vm106, %v107, %v105
    %v109 = vadd.f32 %v108, 1e-07
    %v110 = vmul.f32 %v109, %v80
    %v111 = vrcp.pop %v110
    %v112 = vmul.f32 %v86, %v111
    %v113 = vmul.f32 %v83, 1.442695
    %v114 = vpow.pop %v113
    %115 = vadd.xlane.f32.xlu0 %v114
    %v116 = vpop.xlane.xlu0 %115
    %v117 = vlog2.pop %v116
    %v118 = vmul.f32 %v117, 0.6931472
    %v119 = vmul.f32 %v112, 1.442695
    %v120 = vpow.pop %v119
    %121 = vadd.xlane.f32.xlu0 %v120
    %v122 = vpop.xlane.xlu0 %121
    %v123 = vlog2.pop %v122
    %v124 = vmul.f32 %v123, 0.6931472
    %v125 = vrcp.pop %v122
    %v126 = vmul.f32 %v120, %v125
    %v127 = vsub.f32 %v112, %v83
    %v128 = vsub.f32 %v118, %v124
    %v129 = vadd.f32 %v127, %v128
    %v130 = vmul.f32 %v126, %v129
    %131 = vadd.xlane.f32.xlu0 %v130
    %v132 = vpop.xlane.xlu0 %131
    %v133 = vrot.slane %v132, 4
    %v134 = vadd.f32 %v132, %v133
    %v135 = vrot.slane %v134, 2
    %v136 = vadd.f32 %v134, %v135
    %v137 = vrot.slane %v136, 1
    %v138 = vadd.f32 %v136, %v137
    %s139 = vtos %v138
    %v140 = vstv %s139
    %141 = vst [vmem:[#allocation8] sm:$0xff] %v140
    // Predicated region
    $region22: #{tpu_custom_call.1} parent=1 // pred_check
      _
    $region23: #{tpu_custom_call.1} parent=1 // pred_check_branch
      %143 = sbr.rel (0) target = $region25
    $region24: #{tpu_custom_call.1} parent=1 // pred_region
      %145 = vsyncadd [#allocation5], 0
      %s147 = sshll.u32 [#allocation8], 4
      %s148 = int_to_ptr.vmem [resolvable:$true] %s147
      %s149 = sshll.u32 %s3, 4
      %s150 = int_to_ptr.hbm [resolvable:$true] %s149
      %152 = dma.vmem_to_hbm [thread:$0]  %s148, 128, %s150, [#allocation5]
    $region25: #{tpu_custom_call.1} parent=1 // pred_fallthru
      _
    // Predicated region
    $region26: #{tpu_custom_call.1} parent=1 // pred_check
      _
    $region27: #{tpu_custom_call.1} parent=1 // pred_check_branch
      %154 = sbr.rel (0) target = $region29
    $region28: #{tpu_custom_call.1} parent=1 // pred_region
      %156 = dma.done [#allocation5], 128
    $region29: #{tpu_custom_call.1} parent=1 // pred_fallthru
      _
    %157 = vsyncpa [#allocation4], 1
    %158 = vsyncpa [#allocation7], 1
    %159 = vsyncpa [#allocation5], 1

</llo_original>
